<compile_context>
chip_gen: v5e
topology: v5e:2x2
jax: 0.10.0
libtpu: 0.0.40
codegen_flags: <defaults>
</compile_context>

<pallas_src>
import jax
import jax.numpy as jnp
from jax.experimental import pallas as pl
from jax.experimental.pallas import tpu as pltpu


# -----------------------------------------------------------------------------
# Zero-copy identity: output aliases input, kernel body is a no-op.
# -----------------------------------------------------------------------------
def _identity_alias_kernel(x_hbm_ref, o_hbm_ref):
    # The output buffer *is* the input buffer (input_output_aliases={0: 0}),
    # so there is nothing to do: no DMA, no VMEM staging, no vector work.
    del x_hbm_ref, o_hbm_ref


def identity_forward(inputs, input_kws=None):
    """Pallas implementation of Identity.forward(inputs, input_kws) -> inputs.

    `input_kws` is ignored, exactly as in the PyTorch reference.
    """
    del input_kws  # ignored, as in the reference module
    x = inputs
    return pl.pallas_call(
        _identity_alias_kernel,
        out_shape=jax.ShapeDtypeStruct(x.shape, x.dtype),
        in_specs=[pl.BlockSpec(memory_space=pl.ANY)],
        out_specs=pl.BlockSpec(memory_space=pl.ANY),
        input_output_aliases={0: 0},
    )(x)


# -----------------------------------------------------------------------------
# Materializing identity: lane-dense, row-tiled VMEM copy (fresh output buffer).
# -----------------------------------------------------------------------------
_LANES = 512            # lane axis: multiple of 128 -> unmasked full-width vld/vst
_MAX_TILE_ROWS = 1024   # f32: 1024 x 512 x 4 B = 2 MiB/tile; ~8 MiB resident with
                        # double-buffered input + output (fits every generation)


def _identity_copy_kernel(x_ref, o_ref):
    o_ref[...] = x_ref[...]


def _sublane_multiple(dtype):
    # Dtype-dependent (sublane, 128) tiling: 8 for 4-byte, 16 for 2-byte,
    # 32 for 1-byte element types.
    itemsize = jnp.dtype(dtype).itemsize
    return max(8, 32 // max(itemsize, 1))


def identity_copy_forward(inputs, input_kws=None):
    """Identity that materializes a fresh output buffer via a tiled VMEM copy."""
    del input_kws
    x = inputs
    orig_shape, orig_dtype = x.shape, x.dtype
    total = x.size
    if total == 0:
        return x

    # Flatten to a lane-dense 2D slab: last dim = _LANES (multiple of 128).
    flat = x.reshape(-1)
    pad = (-total) % _LANES
    if pad:
        flat = jnp.pad(flat, (0, pad))
    rows = flat.size // _LANES
    x2 = flat.reshape(rows, _LANES)

    # Row tile: full rows for small inputs, otherwise a sublane-aligned tile.
    if rows <= _MAX_TILE_ROWS:
        tile_rows = rows
    else:
        sub = _sublane_multiple(orig_dtype)
        tile_rows = max(sub, (_MAX_TILE_ROWS // sub) * sub)

    grid = (pl.cdiv(rows, tile_rows),)

    out2 = pl.pallas_call(
        _identity_copy_kernel,
        out_shape=jax.ShapeDtypeStruct((rows, _LANES), orig_dtype),
        grid=grid,
        in_specs=[pl.BlockSpec((tile_rows, _LANES), lambda i: (i, 0))],
        out_specs=pl.BlockSpec((tile_rows, _LANES), lambda i: (i, 0)),
        compiler_params=pltpu.CompilerParams(
            dimension_semantics=("parallel",),  # independent tiles; v7x 2-TC shard
        ),
    )(x2)

    out_flat = out2.reshape(-1)
    if pad:
        out_flat = out_flat[:total]
    return out_flat.reshape(orig_shape)


if __name__ == "__main__":
    key = jax.random.PRNGKey(0)
    # Small NCHW input: batch=2, channels=4, spatial=16x16
    x = jax.random.normal(key, (2, 4, 16, 16), dtype=jnp.float32)
    input_kws = {}  # ignored, as in the reference module

    # Primary path: zero-copy identity via buffer aliasing.
    y = jax.block_until_ready(identity_forward(x, input_kws))
    assert y.shape == x.shape, f"shape mismatch: {y.shape} vs {x.shape}"
    assert y.dtype == x.dtype, f"dtype mismatch: {y.dtype} vs {x.dtype}"
    assert jnp.array_equal(y, x), "identity (alias) output does not match input"

    # Materializing variant: tiled, lane-dense VMEM copy.
    y2 = jax.block_until_ready(identity_copy_forward(x, input_kws))
    assert y2.shape == x.shape and y2.dtype == x.dtype
    assert jnp.array_equal(y2, x), "identity (copy) output does not match input"

    print("KERNEL_OK")
</pallas_src>

<mosaic_0001>
module attributes {stable_mosaic.version = 11 : i64} {
  func.func @_identity_alias_kernel(%arg0: memref<2x4x16x16xf32, #tpu.memory_space<any>>, %arg1: memref<2x4x16x16xf32, #tpu.memory_space<any>>) attributes {dimension_semantics = [], scalar_prefetch = 0 : i64, scratch_operands = 0 : i64, tpu.core_type = #tpu.core_type<tc>} {
    return
  }
}

</mosaic_0001>

<llo_original>
// kernel: tpu_custom_call.1
$region0: #{tpu_custom_call.1}
  #allocation0 [shape = 'u32[]', space=smem, size = 0x4, offset = 0x4, fixed_abs, tag = 'smem constant byte address 0x4 - core index']
  #allocation1 [shape = 'u32[72,128]{1,0:T(1,128)}', space=vmem, size = 0x9000, scoped, tag = 'internal scratch']
  %s0 = inlined_call_operand.hbm [shape: f32[2,4,16,16], index: 0, kind: input, shape index: {}, may-alias: {0,1}]
  %s1 = inlined_call_operand.hbm [shape: f32[2,4,16,16], index: 1, kind: output, shape index: {}, may-alias: {0,1}]
  %s2 = sld [smem:[#allocation0]]
  $region2: #{tpu_custom_call.1} parent=0
    _
  %s4 = ssub.s32 1, %s2
  %s5 = scalar_select 0, %s4, %s2

</llo_original>
